<compile_context>
chip_gen: v6e
topology: v6e:2x2x1
jax: 0.10.0
libtpu: 0.0.40
codegen_flags: <defaults>
</compile_context>

<pallas_src>
import jax
import jax.numpy as jnp
from jax.experimental import pallas as pl
from jax.experimental.pallas import tpu as pltpu


def _gelu_exact(x):
    # PyTorch nn.GELU() default is the exact erf formulation.
    return 0.5 * x * (1.0 + jax.lax.erf(x * 0.7071067811865475))


def predictor_ss_kernel(x_ref, w1_ref, b1_ref, w2_ref, b2_ref, w3_ref, o_ref):
    # x_ref:  (tm, 2E)     row tile of the flattened pair embedding
    # w3_ref: (1, 1, E)    pair_out weight row (broadcast over chunks in-kernel)
    # o_ref:  (G, 1, 128)  lane-dense output block; row r -> (r//128, 0, r%128)
    g = o_ref.shape[0]
    e = w2_ref.shape[0]

    x = x_ref[...]                              # keep input dtype for the MXU
    h = jnp.dot(x, w1_ref[...], preferred_element_type=jnp.float32)
    h = _gelu_exact(h + b1_ref[...].astype(jnp.float32))

    h = jnp.dot(h.astype(w2_ref.dtype), w2_ref[...],
                preferred_element_type=jnp.float32)
    h = _gelu_exact(h + b2_ref[...].astype(jnp.float32))

    # Final Linear(E -> 1), emitted lane-dense: split rows into 128-row chunks
    # (sublane-aligned, free reshape) and contract E against the w3 row per
    # chunk, (G,1,E) x (G,128,E) -> (G,1,128), so stores are full 128-lane vst
    # and the writeback DMA is contiguous.  b3 is added in the wrapper.
    h3 = h.reshape(g, 128, e)
    w3 = jnp.broadcast_to(w3_ref[...].astype(jnp.float32), (g, 1, e))
    out = jnp.einsum("god,gqd->goq", w3, h3,
                     preferred_element_type=jnp.float32)
    o_ref[...] = out.astype(o_ref.dtype)


def _pick_tiling(n_rows, e, x_dtype, w_dtype):
    """Choose g = 128-row chunks per grid step from explicit VMEM accounting.

    Returns (g, rows128, num_tiles, vmem_limit_bytes)."""
    x_dsize = jnp.dtype(x_dtype).itemsize
    w_dsize = jnp.dtype(w_dtype).itemsize
    rows128 = pl.cdiv(n_rows, 128)

    # Per-128-row-chunk VMEM cost: double-buffered x DMA + one in-kernel copy
    # (3x), two f32 h intermediates plus matmul-output slack (3x), and the
    # double-buffered f32 output block.
    per_chunk = 128 * (3 * (2 * e) * x_dsize + 3 * e * 4) + 2 * 128 * 4
    # Resident weights/biases (double-buffered by BlockSpec even though the
    # index map is invariant).
    fixed = 2 * ((2 * e) * e + e * e + 3 * e) * w_dsize

    budget = 24 << 20            # safe on v5e/v6e/v7x with explicit vmem limit
    avail = budget - fixed
    g = max(1, avail // per_chunk) if avail > per_chunk else 1

    # HBM-side cap: ~8 MiB of x per step is past the measured roofline knee.
    g = min(g, max(1, (8 << 20) // max(128 * 2 * e * x_dsize, 1)))
    g = min(g, rows128)

    # Grid-step floor: >=2 steps whenever there are >=2 tiles of rows (v7x has
    # 2 TensorCores sharded only via the "parallel" grid axis), aiming for ~8
    # steps on large inputs, but never below 512-row tiles just to get there.
    if rows128 >= 2:
        g = min(g, rows128 // 2)
        g = min(g, max(4, pl.cdiv(rows128, 8)))
    g = max(1, g)

    num_tiles = pl.cdiv(rows128, g)
    vmem_limit = int(1.3 * (fixed + g * per_chunk))
    vmem_limit = int(min(48 << 20, max(32 << 20, vmem_limit)))
    return g, rows128, num_tiles, vmem_limit


@jax.jit
def predictor_ss_forward(pair_embedding, params):
    """pair_embedding: (..., 2*E) array. Returns (..., 1) like the PyTorch module."""
    w1, b1, w2, b2, w3, b3 = params
    two_e = pair_embedding.shape[-1]
    e = w1.shape[1]
    assert w1.shape == (two_e, e)

    lead_shape = pair_embedding.shape[:-1]
    x = pair_embedding.reshape(-1, two_e)
    n = x.shape[0]

    g, rows128, num_tiles, vmem_limit = _pick_tiling(n, e, x.dtype, w1.dtype)
    tm = g * 128
    out_rows = num_tiles * g          # pad output chunks so no OOB output block

    # Biases / head weight in lane-friendly, VMEM-resident layouts.
    b1r = b1.reshape(1, e)
    b2r = b2.reshape(1, e)
    w3r = w3.reshape(1, 1, e)

    out = pl.pallas_call(
        predictor_ss_kernel,
        out_shape=jax.ShapeDtypeStruct((out_rows, 1, 128), jnp.float32),
        grid_spec=pltpu.PrefetchScalarGridSpec(
            num_scalar_prefetch=0,
            grid=(num_tiles,),
            in_specs=[
                pl.BlockSpec((tm, two_e), lambda i: (i, 0)),    # x row tile
                pl.BlockSpec((two_e, e), lambda i: (0, 0)),     # W1 (resident)
                pl.BlockSpec((1, e), lambda i: (0, 0)),         # b1
                pl.BlockSpec((e, e), lambda i: (0, 0)),         # W2
                pl.BlockSpec((1, e), lambda i: (0, 0)),         # b2
                pl.BlockSpec((1, 1, e), lambda i: (0, 0, 0)),   # w3 row
            ],
            out_specs=pl.BlockSpec((g, 1, 128), lambda i: (i, 0, 0)),
        ),
        compiler_params=pltpu.CompilerParams(
            dimension_semantics=("parallel",),
            vmem_limit_bytes=vmem_limit),
    )(x, w1, b1r, w2, b2r, w3r)

    # Drop lane/tail padding, add the scalar head bias (f32, before any cast),
    # and restore the leading shape.  All of this fuses into one small XLA op.
    y = out.reshape(out_rows * 128)[:n] + b3.astype(jnp.float32)
    return y.reshape(*lead_shape, 1).astype(pair_embedding.dtype)


def init_params(key, embedding_dim, dtype=jnp.float32):
    """Deterministic synthetic init. Weights stored as (in, out) so the kernel
    computes x @ W + b (equivalent to PyTorch's x @ W_t.T + b)."""
    e = embedding_dim
    ks = jax.random.split(key, 6)
    scale1 = 1.0 / jnp.sqrt(2.0 * e)
    scale2 = 1.0 / jnp.sqrt(1.0 * e)
    w1 = (jax.random.normal(ks[0], (2 * e, e)) * scale1).astype(dtype)
    b1 = (jax.random.normal(ks[1], (e,)) * 0.01).astype(dtype)
    w2 = (jax.random.normal(ks[2], (e, e)) * scale2).astype(dtype)
    b2 = (jax.random.normal(ks[3], (e,)) * 0.01).astype(dtype)
    w3 = (jax.random.normal(ks[4], (e, 1)) * scale2).astype(dtype)
    b3 = (jax.random.normal(ks[5], (1,)) * 0.01).astype(dtype)
    return (w1, b1, w2, b2, w3, b3)


def reference_forward(pair_embedding, params):
    """Pure-JAX reference of the PyTorch forward (sanity check)."""
    w1, b1, w2, b2, w3, b3 = params
    h = _gelu_exact(pair_embedding @ w1 + b1)
    h = _gelu_exact(h @ w2 + b2)
    return h @ w3 + b3


if __name__ == "__main__":
    key = jax.random.PRNGKey(0)
    k_x, k_p = jax.random.split(key)

    embedding_dim = 32           # E
    batch, seq = 2, 8            # pair embedding over an (seq x seq) grid

    # pair_embedding: (B, L, L, 2*E) — concatenation of two E-dim embeddings.
    pair_embedding = jax.random.normal(
        k_x, (batch, seq, seq, 2 * embedding_dim), dtype=jnp.float32)

    params = init_params(k_p, embedding_dim)

    out = predictor_ss_forward(pair_embedding, params)
    out = jax.block_until_ready(out)

    assert out.shape == (batch, seq, seq, 1), out.shape

    ref = reference_forward(pair_embedding, params)
    assert jnp.allclose(out, ref, atol=1e-4, rtol=1e-4), (
        float(jnp.max(jnp.abs(out - ref))))

    print("KERNEL_OK")
</pallas_src>

<mosaic_0001>
module attributes {stable_mosaic.version = 11 : i64} {
  func.func @predictor_ss_kernel(%arg0: i32, %arg1: memref<128x64xf32, #tpu.memory_space<vmem>>, %arg2: memref<64x32xf32, #tpu.memory_space<vmem>>, %arg3: memref<1x32xf32, #tpu.memory_space<vmem>>, %arg4: memref<32x32xf32, #tpu.memory_space<vmem>>, %arg5: memref<1x32xf32, #tpu.memory_space<vmem>>, %arg6: memref<1x1x32xf32, #tpu.memory_space<vmem>>, %arg7: memref<1x1x128xf32, #tpu.memory_space<vmem>>) attributes {dimension_semantics = [#tpu.dimension_semantics<parallel>], iteration_bounds = array<i64: 1>, scalar_prefetch = 0 : i64, scratch_operands = 0 : i64, tpu.core_type = #tpu.core_type<tc>, window_params = [{transform_indices = @transform_0, window_bounds = array<i64: 128, 64>}, {pipeline_mode = #tpu.pipeline_mode<synchronous>, transform_indices = @transform_1, window_bounds = array<i64: 64, 32>}, {pipeline_mode = #tpu.pipeline_mode<synchronous>, transform_indices = @transform_2, window_bounds = array<i64: 1, 32>}, {pipeline_mode = #tpu.pipeline_mode<synchronous>, transform_indices = @transform_3, window_bounds = array<i64: 32, 32>}, {pipeline_mode = #tpu.pipeline_mode<synchronous>, transform_indices = @transform_4, window_bounds = array<i64: 1, 32>}, {pipeline_mode = #tpu.pipeline_mode<synchronous>, transform_indices = @transform_5, window_bounds = array<i64: 1, 1, 32>}, {transform_indices = @transform_6, window_bounds = array<i64: 1, 1, 128>}]} {
    %c0 = arith.constant 0 : index
    %c0_0 = arith.constant 0 : index
    %0 = vector.load %arg1[%c0, %c0_0] : memref<128x64xf32, #tpu.memory_space<vmem>>, vector<128x64xf32>
    %c0_1 = arith.constant 0 : index
    %c0_2 = arith.constant 0 : index
    %1 = vector.load %arg2[%c0_1, %c0_2] : memref<64x32xf32, #tpu.memory_space<vmem>>, vector<64x32xf32>
    %cst = arith.constant dense<0.000000e+00> : vector<128x32xf32>
    %2 = tpu.matmul %0, %1, %cst {dimension_numbers = #tpu.dot_dimension_numbers<[1], [0], [0], [1], [0, 0, 1, 1], [], []>} : vector<128x64xf32>, vector<64x32xf32>, vector<128x32xf32> -> vector<128x32xf32>
    %c0_3 = arith.constant 0 : index
    %c0_4 = arith.constant 0 : index
    %3 = vector.load %arg3[%c0_3, %c0_4] : memref<1x32xf32, #tpu.memory_space<vmem>>, vector<1x32xf32>
    %4 = vector.broadcast %3 : vector<1x32xf32> to vector<128x32xf32>
    %5 = arith.addf %2, %4 : vector<128x32xf32>
    %cst_5 = arith.constant 5.000000e-01 : f32
    %6 = vector.broadcast %cst_5 : f32 to vector<128x32xf32>
    %7 = arith.mulf %6, %5 : vector<128x32xf32>
    %cst_6 = arith.constant 0.707106769 : f32
    %8 = vector.broadcast %cst_6 : f32 to vector<128x32xf32>
    %9 = arith.mulf %5, %8 : vector<128x32xf32>
    %10 = math.erf %9 : vector<128x32xf32>
    %cst_7 = arith.constant 1.000000e+00 : f32
    %11 = vector.broadcast %cst_7 : f32 to vector<128x32xf32>
    %12 = arith.addf %11, %10 : vector<128x32xf32>
    %13 = arith.mulf %7, %12 : vector<128x32xf32>
    %c0_8 = arith.constant 0 : index
    %c0_9 = arith.constant 0 : index
    %14 = vector.load %arg4[%c0_8, %c0_9] : memref<32x32xf32, #tpu.memory_space<vmem>>, vector<32x32xf32>
    %cst_10 = arith.constant dense<0.000000e+00> : vector<128x32xf32>
    %15 = tpu.matmul %13, %14, %cst_10 {dimension_numbers = #tpu.dot_dimension_numbers<[1], [0], [0], [1], [0, 0, 1, 1], [], []>} : vector<128x32xf32>, vector<32x32xf32>, vector<128x32xf32> -> vector<128x32xf32>
    %c0_11 = arith.constant 0 : index
    %c0_12 = arith.constant 0 : index
    %16 = vector.load %arg5[%c0_11, %c0_12] : memref<1x32xf32, #tpu.memory_space<vmem>>, vector<1x32xf32>
    %17 = vector.broadcast %16 : vector<1x32xf32> to vector<128x32xf32>
    %18 = arith.addf %15, %17 : vector<128x32xf32>
    %cst_13 = arith.constant 5.000000e-01 : f32
    %19 = vector.broadcast %cst_13 : f32 to vector<128x32xf32>
    %20 = arith.mulf %19, %18 : vector<128x32xf32>
    %cst_14 = arith.constant 0.707106769 : f32
    %21 = vector.broadcast %cst_14 : f32 to vector<128x32xf32>
    %22 = arith.mulf %18, %21 : vector<128x32xf32>
    %23 = math.erf %22 : vector<128x32xf32>
    %cst_15 = arith.constant 1.000000e+00 : f32
    %24 = vector.broadcast %cst_15 : f32 to vector<128x32xf32>
    %25 = arith.addf %24, %23 : vector<128x32xf32>
    %26 = arith.mulf %20, %25 : vector<128x32xf32>
    %27 = vector.shape_cast %26 : vector<128x32xf32> to vector<1x128x32xf32>
    %c0_16 = arith.constant 0 : index
    %c0_17 = arith.constant 0 : index
    %c0_18 = arith.constant 0 : index
    %28 = vector.load %arg6[%c0_16, %c0_17, %c0_18] : memref<1x1x32xf32, #tpu.memory_space<vmem>>, vector<1x1x32xf32>
    "tpu.trace_start"() <{level = 10 : i32, message = "god,gqd->goq"}> : () -> ()
    %cst_19 = arith.constant dense<0.000000e+00> : vector<1x1x128xf32>
    %29 = tpu.matmul %28, %27, %cst_19 {dimension_numbers = #tpu.dot_dimension_numbers<[2], [2], [1], [1], [0, 0, 0, 1, 1, 1], [0], [0]>} : vector<1x1x32xf32>, vector<1x128x32xf32>, vector<1x1x128xf32> -> vector<1x1x128xf32>
    "tpu.trace_stop"() : () -> ()
    %c0_20 = arith.constant 0 : index
    %c0_21 = arith.constant 0 : index
    %c0_22 = arith.constant 0 : index
    %30 = vector.load %arg7[%c0_20, %c0_21, %c0_22] : memref<1x1x128xf32, #tpu.memory_space<vmem>>, vector<1x1x128xf32>
    tpu.vector_store %arg7[%c0_20, %c0_21, %c0_22], %29 {strides = array<i32>} : memref<1x1x128xf32, #tpu.memory_space<vmem>>, vector<1x1x128xf32>,
    return
  }
  func.func @transform_0(%arg0: i32) -> (i32, i32) {
    %c0_i32 = arith.constant 0 : i32
    %c0_i32_0 = arith.constant 0 : i32
    return %arg0, %c0_i32 : i32, i32
  }
  func.func @transform_1(%arg0: i32) -> (i32, i32) {
    %c0_i32 = arith.constant 0 : i32
    %c0_i32_0 = arith.constant 0 : i32
    %c0_i32_1 = arith.constant 0 : i32
    return %c0_i32, %c0_i32_0 : i32, i32
  }
  func.func @transform_2(%arg0: i32) -> (i32, i32) {
    %c0_i32 = arith.constant 0 : i32
    %c0_i32_0 = arith.constant 0 : i32
    %c0_i32_1 = arith.constant 0 : i32
    return %c0_i32, %c0_i32_0 : i32, i32
  }
  func.func @transform_3(%arg0: i32) -> (i32, i32) {
    %c0_i32 = arith.constant 0 : i32
    %c0_i32_0 = arith.constant 0 : i32
    %c0_i32_1 = arith.constant 0 : i32
    return %c0_i32, %c0_i32_0 : i32, i32
  }
  func.func @transform_4(%arg0: i32) -> (i32, i32) {
    %c0_i32 = arith.constant 0 : i32
    %c0_i32_0 = arith.constant 0 : i32
    %c0_i32_1 = arith.constant 0 : i32
    return %c0_i32, %c0_i32_0 : i32, i32
  }
  func.func @transform_5(%arg0: i32) -> (i32, i32, i32) {
    %c0_i32 = arith.constant 0 : i32
    %c0_i32_0 = arith.constant 0 : i32
    %c0_i32_1 = arith.constant 0 : i32
    %c0_i32_2 = arith.constant 0 : i32
    return %c0_i32, %c0_i32_0, %c0_i32_1 : i32, i32, i32
  }
  func.func @transform_6(%arg0: i32) -> (i32, i32, i32) {
    %c0_i32 = arith.constant 0 : i32
    %c0_i32_0 = arith.constant 0 : i32
    %c0_i32_1 = arith.constant 0 : i32
    return %arg0, %c0_i32, %c0_i32_0 : i32, i32, i32
  }
}

</mosaic_0001>

<llo_original>
// kernel: predictor_ss_forward.1
$region0: #{predictor_ss_forward.1}
  #allocation0 [shape = 'u32[]', space=smem, size = 0x4, offset = 0x4, fixed_abs, tag = 'smem constant byte address 0x4 - core index']
  #allocation1 [shape = 'u32[144,128]{1,0:T(1,128)}', space=vmem, size = 0x12000, scoped, tag = 'internal scratch']
  %s0 = inlined_call_operand.hbm [shape: f32[128,64], index: 0, kind: input, shape index: {}]
  %s1 = inlined_call_operand.vmem [shape: f32[64,32], index: 1, kind: input, shape index: {}]
  %s2 = inlined_call_operand.vmem [shape: f32[1,32], index: 2, kind: input, shape index: {}]
  %s3 = inlined_call_operand.vmem [shape: f32[32,32], index: 3, kind: input, shape index: {}]
  %s4 = inlined_call_operand.vmem [shape: f32[1,32], index: 4, kind: input, shape index: {}]
  %s5 = inlined_call_operand.vmem [shape: f32[1,1,32], index: 5, kind: input, shape index: {}]
  %s6 = inlined_call_operand.vmem [shape: f32[1,1,128], index: 6, kind: output, shape index: {}]
  %s7 = sld [smem:[#allocation0]]
  $region38: #{predictor_ss_forward.1} parent=0
    _
  %s9 = ssub.s32 1, %s7
  %s10 = scalar_select 0, %s9, %s7
  $region1: #{predictor_ss_forward.1} parent=0
    #allocation2 [shape = 'u8[65536]{0}', space=vmem, size = 0x10000, scoped, tag = 'input window, operand 0, single buffered']
    #allocation3 [shape = 's32[1]{0}', space=sflag, size = 0x4, scoped, tag = 'scoped memory for predictor_ss_forward.1']
    %11 = vsyncpa [#allocation3], 0
    // Predicated region
    $region2: #{predictor_ss_forward.1} parent=1 // pred_check
      _
    $region3: #{predictor_ss_forward.1} parent=1 // pred_check_branch
      %13 = sbr.rel (0) target = $region5
    $region4: #{predictor_ss_forward.1} parent=1 // pred_region
      %s15 = ssub.s32 2048, 2048
      %16 = vsyncadd [#allocation3], %s15
      %s17 = sshll.u32 [#allocation2], 4
      %s18 = int_to_ptr.vmem [resolvable:$true] %s17
      %23 = dma.hbm_to_vmem [thread:$0]  %s0, 2048, %s18, [#allocation3], 128, 128, 8
    $region5: #{predictor_ss_forward.1} parent=1 // pred_fallthru
      _
    // Predicated region
    $region6: #{predictor_ss_forward.1} parent=1 // pred_check
      _
    $region7: #{predictor_ss_forward.1} parent=1 // pred_check_branch
      %25 = sbr.rel (0) target = $region9
    $region8: #{predictor_ss_forward.1} parent=1 // pred_region
      _
    $region9: #{predictor_ss_forward.1} parent=1 // pred_fallthru
      _
    // Predicated region
    $region10: #{predictor_ss_forward.1} parent=1 // pred_check
      _
    $region11: #{predictor_ss_forward.1} parent=1 // pred_check_branch
      %27 = sbr.rel (0) target = $region13
    $region12: #{predictor_ss_forward.1} parent=1 // pred_region
      _
    $region13: #{predictor_ss_forward.1} parent=1 // pred_fallthru
      _
    // Predicated region
    $region14: #{predictor_ss_forward.1} parent=1 // pred_check
      _
    $region15: #{predictor_ss_forward.1} parent=1 // pred_check_branch
      %29 = sbr.rel (0) target = $region17
    $region16: #{predictor_ss_forward.1} parent=1 // pred_region
      _
    $region17: #{predictor_ss_forward.1} parent=1 // pred_fallthru
      _
    // Predicated region
    $region18: #{predictor_ss_forward.1} parent=1 // pred_check
      _
    $region19: #{predictor_ss_forward.1} parent=1 // pred_check_branch
      %31 = sbr.rel (0) target = $region21
    $region20: #{predictor_ss_forward.1} parent=1 // pred_region
      _
    $region21: #{predictor_ss_forward.1} parent=1 // pred_fallthru
      _
    // Predicated region
    $region22: #{predictor_ss_forward.1} parent=1 // pred_check
      _
    $region23: #{predictor_ss_forward.1} parent=1 // pred_check_branch
      %33 = sbr.rel (0) target = $region25
    $region24: #{predictor_ss_forward.1} parent=1 // pred_region
      _
    $region25: #{predictor_ss_forward.1} parent=1 // pred_fallthru
      _
    // Predicated region
    $region26: #{predictor_ss_forward.1} parent=1 // pred_check
      _
    $region27: #{predictor_ss_forward.1} parent=1 // pred_check_branch
      %35 = sbr.rel (0) target = $region29
    $region28: #{predictor_ss_forward.1} parent=1 // pred_region
      %36 = dma.done [#allocation3], 2048
    $region29: #{predictor_ss_forward.1} parent=1 // pred_fallthru
      _
    %v37 = vld [vmem:[#allocation2] sm:$0xff]
    %v38 = vld [vmem:[#allocation2 + $0x8] sm:$0xff]
    %v39 = vld [vmem:[#allocation2 + $0x10] sm:$0xff]
    %v40 = vld [vmem:[#allocation2 + $0x18] sm:$0xff]
    %v41 = vld [vmem:[#allocation2 + $0x20] sm:$0xff]
    %v42 = vld [vmem:[#allocation2 + $0x28] sm:$0xff]
    %v43 = vld [vmem:[#allocation2 + $0x30] sm:$0xff]
    %v44 = vld [vmem:[#allocation2 + $0x38] sm:$0xff]
    %v45 = vld [vmem:[#allocation2 + $0x40] sm:$0xff]
    %v46 = vld [vmem:[#allocation2 + $0x48] sm:$0xff]
    %v47 = vld [vmem:[#allocation2 + $0x50] sm:$0xff]
    %v48 = vld [vmem:[#allocation2 + $0x58] sm:$0xff]
    %v49 = vld [vmem:[#allocation2 + $0x60] sm:$0xff]
    %v50 = vld [vmem:[#allocation2 + $0x68] sm:$0xff]
    %v51 = vld [vmem:[#allocation2 + $0x70] sm:$0xff]
    %v52 = vld [vmem:[#allocation2 + $0x78] sm:$0xff]
    %v53 = vld [vmem:[%s1] sm:$0xff]
    %v54 = vld [vmem:[%s1 + $0x8] sm:$0xff]
    %v55 = vld [vmem:[%s1 + $0x10] sm:$0xff]
    %v56 = vld [vmem:[%s1 + $0x18] sm:$0xff]
    %v57 = vld [vmem:[%s1 + $0x20] sm:$0xff]
    %v58 = vld [vmem:[%s1 + $0x28] sm:$0xff]
    %v59 = vld [vmem:[%s1 + $0x30] sm:$0xff]
    %v60 = vld [vmem:[%s1 + $0x38] sm:$0xff]
    %v61 = vld [vmem:[%s2] sm:$0x1]
    %v63 = vlaneseq
    %v64 = vshrl.u32 %v63, 7
    %v65 = vsub.s32 0, %v64
    %v66 = vrot.slane %v61, %v65
    %vm68 = vcmask 523264
    %v70 = vsel %vm68, %v37, 0
    %v73 = vsel %vm68, %v38, 0
    %v76 = vsel %vm68, %v39, 0
    %v79 = vsel %vm68, %v40, 0
    %v82 = vsel %vm68, %v41, 0
    %v85 = vsel %vm68, %v42, 0
    %v88 = vsel %vm68, %v43, 0
    %v91 = vsel %vm68, %v44, 0
    %v94 = vsel %vm68, %v45, 0
    %v97 = vsel %vm68, %v46, 0
    %v100 = vsel %vm68, %v47, 0
    %v103 = vsel %vm68, %v48, 0
    %v106 = vsel %vm68, %v49, 0
    %v109 = vsel %vm68, %v50, 0
    %v112 = vsel %vm68, %v51, 0
    %v115 = vsel %vm68, %v52, 0
    %117 = vmatprep.subr.mxu0 0.0
    %118 = vmatpush1.msra.mxu0 0.0
    %119 = vmatprep.subr.mxu0 0.0
    %120 = vmatpush1.msra.mxu0 0.0
    %121 = vmatprep.subr.mxu0 0.0
    %122 = vmatpush1.msra.mxu0 0.0
    %123 = vmatprep.subr.mxu0 0.0
    %124 = vmatpush1.msra.mxu0 0.0
    %125 = vmatprep.subr.mxu0 0.0
    %126 = vmatpush1.msra.mxu0 0.0
    %127 = vmatprep.subr.mxu0 0.0
    %128 = vmatpush1.msra.mxu0 0.0
    %129 = vmatprep.subr.mxu0 0.0
    %130 = vmatpush1.msra.mxu0 0.0
    %131 = vmatprep.subr.mxu0 0.0
    %132 = vmatpush1.msra.mxu0 0.0
    %133 = vmatprep.subr.mxu0 0.0
    %134 = vmatpush1.msra.mxu0 %v60
    %135 = vmatprep.subr.mxu0 0.0
    %136 = vmatpush1.msra.mxu0 %v59
    %137 = vmatprep.subr.mxu0 0.0
    %138 = vmatpush1.msra.mxu0 %v58
    %139 = vmatprep.subr.mxu0 0.0
    %140 = vmatpush1.msra.mxu0 %v57
    %141 = vmatprep.subr.mxu0 0.0
    %142 = vmatpush1.msra.mxu0 %v56
    %143 = vmatprep.subr.mxu0 0.0
    %144 = vmatpush1.msra.mxu0 %v55
    %145 = vmatprep.subr.mxu0 0.0
    %146 = vmatpush1.msra.mxu0 %v54
    %147 = vmatprep.subr.mxu0 0.0
    %148 = vmatpush1.msra.mxu0 %v53
    %149 = vmatprep.subr.mxu0 0.0
    %150 = vmatpush2.msra.mxu0 0.0
    %151 = vmatprep.subr.mxu0 0.0
    %152 = vmatpush2.msra.mxu0 0.0
    %153 = vmatprep.subr.mxu0 0.0
    %154 = vmatpush2.msra.mxu0 0.0
    %155 = vmatprep.subr.mxu0 0.0
    %156 = vmatpush2.msra.mxu0 0.0
    %157 = vmatprep.subr.mxu0 0.0
    %158 = vmatpush2.msra.mxu0 0.0
    %159 = vmatprep.subr.mxu0 0.0
    %160 = vmatpush2.msra.mxu0 0.0
    %161 = vmatprep.subr.mxu0 0.0
    %162 = vmatpush2.msra.mxu0 0.0
    %163 = vmatprep.subr.mxu0 0.0
    %164 = vmatpush2.msra.mxu0 0.0
    %165 = vmatprep.subr.mxu0 0.0
    %166 = vmatpush2.msra.mxu0 0.0
    %167 = vmatprep.subr.mxu0 0.0
    %168 = vmatpush2.msra.mxu0 0.0
    %169 = vmatprep.subr.mxu0 0.0
    %170 = vmatpush2.msra.mxu0 0.0
    %171 = vmatprep.subr.mxu0 0.0
    %172 = vmatpush2.msra.mxu0 0.0
    %173 = vmatprep.subr.mxu0 0.0
    %174 = vmatpush2.msra.mxu0 0.0
    %175 = vmatprep.subr.mxu0 0.0
    %176 = vmatpush2.msra.mxu0 0.0
    %177 = vmatprep.subr.mxu0 0.0
    %178 = vmatpush2.msra.mxu0 0.0
    %179 = vmatprep.subr.mxu0 0.0
    %180 = vmatpush2.msra.mxu0 0.0
    %181 = vmatprep.mubr.f32.mxu0 0.0
    %182 = vmatmul.mubr.f32.gmra.mxu0 %v70
    %v183 = vpop.f32.mrf.mxu0
    %v184 = vadd.f32 %v66, %v183
    %v185 = vpop.f32.mrf.mxu0
    %186 = vmatprep.mubr.f32.mxu0 0.0
    %187 = vmatmul.mubr.f32.gmra.mxu0 %v73
    %v188 = vpop.f32.mrf.mxu0
    %v189 = vadd.f32 %v66, %v188
    %v190 = vpop.f32.mrf.mxu0
    %191 = vmatprep.mubr.f32.mxu0 0.0
    %192 = vmatmul.mubr.f32.gmra.mxu0 %v76
    %v193 = vpop.f32.mrf.mxu0
    %v194 = vadd.f32 %v66, %v193
    %v195 = vpop.f32.mrf.mxu0
    %196 = vmatprep.mubr.f32.mxu0 0.0
    %197 = vmatmul.mubr.f32.gmra.mxu0 %v79
    %v198 = vpop.f32.mrf.mxu0
    %v199 = vadd.f32 %v66, %v198
    %v200 = vpop.f32.mrf.mxu0
    %201 = vmatprep.mubr.f32.mxu0 0.0
    %202 = vmatmul.mubr.f32.gmra.mxu0 %v82
    %v203 = vpop.f32.mrf.mxu0
    %v204 = vadd.f32 %v66, %v203
    %v205 = vpop.f32.mrf.mxu0
    %206 = vmatprep.mubr.f32.mxu0 0.0
    %207 = vmatmul.mubr.f32.gmra.mxu0 %v85
    %v208 = vpop.f32.mrf.mxu0
    %v209 = vadd.f32 %v66, %v208
    %v210 = vpop.f32.mrf.mxu0
    %211 = vmatprep.mubr.f32.mxu0 0.0
    %212 = vmatmul.mubr.f32.gmra.mxu0 %v88
    %v213 = vpop.f32.mrf.mxu0
    %v214 = vadd.f32 %v66, %v213
    %v215 = vpop.f32.mrf.mxu0
    %216 = vmatprep.mubr.f32.mxu0 0.0
    %217 = vmatmul.mubr.f32.gmra.mxu0 %v91
    %v218 = vpop.f32.mrf.mxu0
    %v219 = vadd.f32 %v66, %v218
    %v220 = vpop.f32.mrf.mxu0
    %221 = vmatprep.mubr.f32.mxu0 0.0
    %222 = vmatmul.mubr.f32.gmra.mxu0 %v94
    %v223 = vpop.f32.mrf.mxu0
    %v224 = vadd.f32 %v66, %v223
    %v225 = vpop.f32.mrf.mxu0
    %226 = vmatprep.mubr.f32.mxu0 0.0
    %227 = vmatmul.mubr.f32.gmra.mxu0 %v97
    %v228 = vpop.f32.mrf.mxu0
    %v229 = vadd.f32 %v66, %v228
    %v230 = vpop.f32.mrf.mxu0
    %231 = vmatprep.mubr.f32.mxu0 0.0
    %232 = vmatmul.mubr.f32.gmra.mxu0 %v100
    %v233 = vpop.f32.mrf.mxu0
    %v234 = vadd.f32 %v66, %v233
    %v235 = vpop.f32.mrf.mxu0
    %236 = vmatprep.mubr.f32.mxu0 0.0
    %237 = vmatmul.mubr.f32.gmra.mxu0 %v103
    %v238 = vpop.f32.mrf.mxu0
    %v239 = vadd.f32 %v66, %v238
    %v240 = vpop.f32.mrf.mxu0
    %241 = vmatprep.mubr.f32.mxu0 0.0
    %242 = vmatmul.mubr.f32.gmra.mxu0 %v106
    %v243 = vpop.f32.mrf.mxu0
    %v244 = vadd.f32 %v66, %v243
    %v245 = vpop.f32.mrf.mxu0
    %246 = vmatprep.mubr.f32.mxu0 0.0
    %247 = vmatmul.mubr.f32.gmra.mxu0 %v109
    %v248 = vpop.f32.mrf.mxu0
    %v249 = vadd.f32 %v66, %v248
    %v250 = vpop.f32.mrf.mxu0
    %251 = vmatprep.mubr.f32.mxu0 0.0
    %252 = vmatmul.mubr.f32.gmra.mxu0 %v112
    %v253 = vpop.f32.mrf.mxu0
    %v254 = vadd.f32 %v66, %v253
    %v255 = vpop.f32.mrf.mxu0
    %256 = vmatprep.mubr.f32.mxu0 0.0
    %257 = vmatmul.mubr.f32.gmra.mxu0 %v115
    %v258 = vpop.f32.mrf.mxu0
    %v259 = vadd.f32 %v66, %v258
    %v260 = vpop.f32.mrf.mxu0
    %261 = vdwg.mxu0
    %v262 = vmul.f32 %v184, 0.5
    %v263 = vmul.f32 %v189, 0.5
    %v264 = vmul.f32 %v194, 0.5
    %v265 = vmul.f32 %v199, 0.5
    %v266 = vmul.f32 %v204, 0.5
    %v267 = vmul.f32 %v209, 0.5
    %v268 = vmul.f32 %v214, 0.5
    %v269 = vmul.f32 %v219, 0.5
    %v270 = vmul.f32 %v224, 0.5
    %v271 = vmul.f32 %v229, 0.5
    %v272 = vmul.f32 %v234, 0.5
    %v273 = vmul.f32 %v239, 0.5
    %v274 = vmul.f32 %v244, 0.5
    %v275 = vmul.f32 %v249, 0.5
    %v276 = vmul.f32 %v254, 0.5
    %v277 = vmul.f32 %v259, 0.5
    %v278 = vmul.f32 %v184, 0.70710677
    %v279 = vmul.f32 %v189, 0.70710677
    %v280 = vmul.f32 %v194, 0.70710677
    %v281 = vmul.f32 %v199, 0.70710677
    %v282 = vmul.f32 %v204, 0.70710677
    %v283 = vmul.f32 %v209, 0.70710677
    %v284 = vmul.f32 %v214, 0.70710677
    %v285 = vmul.f32 %v219, 0.70710677
    %v286 = vmul.f32 %v224, 0.70710677
    %v287 = vmul.f32 %v229, 0.70710677
    %v288 = vmul.f32 %v234, 0.70710677
    %v289 = vmul.f32 %v239, 0.70710677
    %v290 = vmul.f32 %v244, 0.70710677
    %v291 = vmul.f32 %v249, 0.70710677
    %v292 = vmul.f32 %v254, 0.70710677
    %v293 = vmul.f32 %v259, 0.70710677
    %v294 = verf.f32.pop %v278
    %v295 = verf.f32.pop %v279
    %v296 = verf.f32.pop %v280
    %v297 = verf.f32.pop %v281
    %v298 = verf.f32.pop %v282
    %v299 = verf.f32.pop %v283
    %v300 = verf.f32.pop %v284
    %v301 = verf.f32.pop %v285
    %v302 = verf.f32.pop %v286
    %v303 = verf.f32.pop %v287
    %v304 = verf.f32.pop %v288
    %v305 = verf.f32.pop %v289
    %v306 = verf.f32.pop %v290
    %v307 = verf.f32.pop %v291
    %v308 = verf.f32.pop %v292
    %v309 = verf.f32.pop %v293
    %v310 = vadd.f32 %v294, 1.0
    %v311 = vadd.f32 %v295, 1.0
    %v312 = vadd.f32 %v296, 1.0
    %v313 = vadd.f32 %v297, 1.0
    %v314 = vadd.f32 %v298, 1.0
    %v315 = vadd.f32 %v299, 1.0
    %v316 = vadd.f32 %v300, 1.0
    %v317 = vadd.f32 %v301, 1.0
    %v318 = vadd.f32 %v302, 1.0
    %v319 = vadd.f32 %v303, 1.0
    %v320 = vadd.f32 %v304, 1.0
    %v321 = vadd.f32 %v305, 1.0
    %v322 = vadd.f32 %v306, 1.0
    %v323 = vadd.f32 %v307, 1.0
    %v324 = vadd.f32 %v308, 1.0
    %v325 = vadd.f32 %v309, 1.0
    %v326 = vmul.f32 %v262, %v310
    %v327 = vmul.f32 %v263, %v311
    %v328 = vmul.f32 %v264, %v312
    %v329 = vmul.f32 %v265, %v313
    %v330 = vmul.f32 %v266, %v314
    %v331 = vmul.f32 %v267, %v315
    %v332 = vmul.f32 %v268, %v316
    %v333 = vmul.f32 %v269, %v317
    %v334 = vmul.f32 %v270, %v318
    %v335 = vmul.f32 %v271, %v319
    %v336 = vmul.f32 %v272, %v320
    %v337 = vmul.f32 %v273, %v321
    %v338 = vmul.f32 %v274, %v322
    %v339 = vmul.f32 %v275, %v323
    %v340 = vmul.f32 %v276, %v324
    %v341 = vmul.f32 %v277, %v325
    %v342 = vld [vmem:[%s3] sm:$0xff]
    %v343 = vld [vmem:[%s3 + $0x8] sm:$0xff]
    %v344 = vld [vmem:[%s3 + $0x10] sm:$0xff]
    %v345 = vld [vmem:[%s3 + $0x18] sm:$0xff]
    %v346 = vld [vmem:[%s4] sm:$0x1]
    %v348 = vlaneseq
    %v349 = vshrl.u32 %v348, 7
    %v350 = vsub.s32 0, %v349
    %v351 = vrot.slane %v346, %v350
    %vm353 = vcmask 261120
    %v355 = vsel %vm353, %v326, 0
    %v358 = vsel %vm353, %v327, 0
    %v361 = vsel %vm353, %v328, 0
    %v364 = vsel %vm353, %v329, 0
    %v367 = vsel %vm353, %v330, 0
    %v370 = vsel %vm353, %v331, 0
    %v373 = vsel %vm353, %v332, 0
    %v376 = vsel %vm353, %v333, 0
    %v379 = vsel %vm353, %v334, 0
    %v382 = vsel %vm353, %v335, 0
    %v385 = vsel %vm353, %v336, 0
    %v388 = vsel %vm353, %v337, 0
    %v391 = vsel %vm353, %v338, 0
    %v394 = vsel %vm353, %v339, 0
    %v397 = vsel %vm353, %v340, 0
    %v400 = vsel %vm353, %v341, 0
    %402 = vmatprep.subr.mxu0 0.0
    %403 = vmatpush1.msra.mxu0 0.0
    %404 = vmatprep.subr.mxu0 0.0
    %405 = vmatpush1.msra.mxu0 0.0
    %406 = vmatprep.subr.mxu0 0.0
    %407 = vmatpush1.msra.mxu0 0.0
    %408 = vmatprep.subr.mxu0 0.0
    %409 = vmatpush1.msra.mxu0 0.0
    %410 = vmatprep.subr.mxu0 0.0
    %411 = vmatpush1.msra.mxu0 0.0
    %412 = vmatprep.subr.mxu0 0.0
    %413 = vmatpush1.msra.mxu0 0.0
    %414 = vmatprep.subr.mxu0 0.0
    %415 = vmatpush1.msra.mxu0 0.0
    %416 = vmatprep.subr.mxu0 0.0
    %417 = vmatpush1.msra.mxu0 0.0
    %418 = vmatprep.subr.mxu0 0.0
    %419 = vmatpush1.msra.mxu0 0.0
    %420 = vmatprep.subr.mxu0 0.0
    %421 = vmatpush1.msra.mxu0 0.0
    %422 = vmatprep.subr.mxu0 0.0
    %423 = vmatpush1.msra.mxu0 0.0
    %424 = vmatprep.subr.mxu0 0.0
    %425 = vmatpush1.msra.mxu0 0.0
    %426 = vmatprep.subr.mxu0 0.0
    %427 = vmatpush1.msra.mxu0 %v345
    %428 = vmatprep.subr.mxu0 0.0
    %429 = vmatpush1.msra.mxu0 %v344
    %430 = vmatprep.subr.mxu0 0.0
    %431 = vmatpush1.msra.mxu0 %v343
    %432 = vmatprep.subr.mxu0 0.0
    %433 = vmatpush1.msra.mxu0 %v342
    %434 = vmatprep.subr.mxu0 0.0
    %435 = vmatpush2.msra.mxu0 0.0
    %436 = vmatprep.subr.mxu0 0.0
    %437 = vmatpush2.msra.mxu0 0.0
    %438 = vmatprep.subr.mxu0 0.0
    %439 = vmatpush2.msra.mxu0 0.0
    %440 = vmatprep.subr.mxu0 0.0
    %441 = vmatpush2.msra.mxu0 0.0
    %442 = vmatprep.subr.mxu0 0.0
    %443 = vmatpush2.msra.mxu0 0.0
    %444 = vmatprep.subr.mxu0 0.0
    %445 = vmatpush2.msra.mxu0 0.0
    %446 = vmatprep.subr.mxu0 0.0
    %447 = vmatpush2.msra.mxu0 0.0
    %448 = vmatprep.subr.mxu0 0.0
    %449 = vmatpush2.msra.mxu0 0.0
    %450 = vmatprep.subr.mxu0 0.0
    %451 = vmatpush2.msra.mxu0 0.0
    %452 = vmatprep.subr.mxu0 0.0
    %453 = vmatpush2.msra.mxu0 0.0
    %454 = vmatprep.subr.mxu0 0.0
    %455 = vmatpush2.msra.mxu0 0.0
    %456 = vmatprep.subr.mxu0 0.0
    %457 = vmatpush2.msra.mxu0 0.0
    %458 = vmatprep.subr.mxu0 0.0
    %459 = vmatpush2.msra.mxu0 0.0
    %460 = vmatprep.subr.mxu0 0.0
    %461 = vmatpush2.msra.mxu0 0.0
    %462 = vmatprep.subr.mxu0 0.0
    %463 = vmatpush2.msra.mxu0 0.0
    %464 = vmatprep.subr.mxu0 0.0
    %465 = vmatpush2.msra.mxu0 0.0
    %466 = vmatprep.mubr.f32.mxu0 0.0
    %467 = vmatmul.mubr.f32.gmra.mxu0 %v355
    %v468 = vpop.f32.mrf.mxu0
    %v469 = vadd.f32 %v351, %v468
    %v470 = vpop.f32.mrf.mxu0
    %471 = vmatprep.mubr.f32.mxu0 0.0
    %472 = vmatmul.mubr.f32.gmra.mxu0 %v358
    %v473 = vpop.f32.mrf.mxu0
    %v474 = vadd.f32 %v351, %v473
    %v475 = vpop.f32.mrf.mxu0
    %476 = vmatprep.mubr.f32.mxu0 0.0
    %477 = vmatmul.mubr.f32.gmra.mxu0 %v361
    %v478 = vpop.f32.mrf.mxu0
    %v479 = vadd.f32 %v351, %v478
    %v480 = vpop.f32.mrf.mxu0
    %481 = vmatprep.mubr.f32.mxu0 0.0
    %482 = vmatmul.mubr.f32.gmra.mxu0 %v364
    %v483 = vpop.f32.mrf.mxu0
    %v484 = vadd.f32 %v351, %v483
    %v485 = vpop.f32.mrf.mxu0
    %486 = vmatprep.mubr.f32.mxu0 0.0
    %487 = vmatmul.mubr.f32.gmra.mxu0 %v367
    %v488 = vpop.f32.mrf.mxu0
    %v489 = vadd.f32 %v351, %v488
    %v490 = vpop.f32.mrf.mxu0
    %491 = vmatprep.mubr.f32.mxu0 0.0
    %492 = vmatmul.mubr.f32.gmra.mxu0 %v370
    %v493 = vpop.f32.mrf.mxu0
    %v494 = vadd.f32 %v351, %v493
    %v495 = vpop.f32.mrf.mxu0
    %496 = vmatprep.mubr.f32.mxu0 0.0
    %497 = vmatmul.mubr.f32.gmra.mxu0 %v373
    %v498 = vpop.f32.mrf.mxu0
    %v499 = vadd.f32 %v351, %v498
    %v500 = vpop.f32.mrf.mxu0
    %501 = vmatprep.mubr.f32.mxu0 0.0
    %502 = vmatmul.mubr.f32.gmra.mxu0 %v376
    %v503 = vpop.f32.mrf.mxu0
    %v504 = vadd.f32 %v351, %v503
    %v505 = vpop.f32.mrf.mxu0
    %506 = vmatprep.mubr.f32.mxu0 0.0
    %507 = vmatmul.mubr.f32.gmra.mxu0 %v379
    %v508 = vpop.f32.mrf.mxu0
    %v509 = vadd.f32 %v351, %v508
    %v510 = vpop.f32.mrf.mxu0
    %511 = vmatprep.mubr.f32.mxu0 0.0
    %512 = vmatmul.mubr.f32.gmra.mxu0 %v382
    %v513 = vpop.f32.mrf.mxu0
    %v514 = vadd.f32 %v351, %v513
    %v515 = vpop.f32.mrf.mxu0
    %516 = vmatprep.mubr.f32.mxu0 0.0
    %517 = vmatmul.mubr.f32.gmra.mxu0 %v385
    %v518 = vpop.f32.mrf.mxu0
    %v519 = vadd.f32 %v351, %v518
    %v520 = vpop.f32.mrf.mxu0
    %521 = vmatprep.mubr.f32.mxu0 0.0
    %522 = vmatmul.mubr.f32.gmra.mxu0 %v388
    %v523 = vpop.f32.mrf.mxu0
    %v524 = vadd.f32 %v351, %v523
    %v525 = vpop.f32.mrf.mxu0
    %526 = vmatprep.mubr.f32.mxu0 0.0
    %527 = vmatmul.mubr.f32.gmra.mxu0 %v391
    %v528 = vpop.f32.mrf.mxu0
    %v529 = vadd.f32 %v351, %v528
    %v530 = vpop.f32.mrf.mxu0
    %531 = vmatprep.mubr.f32.mxu0 0.0
    %532 = vmatmul.mubr.f32.gmra.mxu0 %v394
    %v533 = vpop.f32.mrf.mxu0
    %v534 = vadd.f32 %v351, %v533
    %v535 = vpop.f32.mrf.mxu0
    %536 = vmatprep.mubr.f32.mxu0 0.0
    %537 = vmatmul.mubr.f32.gmra.mxu0 %v397
    %v538 = vpop.f32.mrf.mxu0
    %v539 = vadd.f32 %v351, %v538
    %v540 = vpop.f32.mrf.mxu0
    %541 = vmatprep.mubr.f32.mxu0 0.0
    %542 = vmatmul.mubr.f32.gmra.mxu0 %v400
    %v543 = vpop.f32.mrf.mxu0
    %v544 = vadd.f32 %v351, %v543
    %v545 = vpop.f32.mrf.mxu0
    %546 = vdwg.mxu0
    %v547 = vmul.f32 %v469, 0.5
    %v548 = vmul.f32 %v474, 0.5
    %v549 = vmul.f32 %v479, 0.5
    %v550 = vmul.f32 %v484, 0.5
    %v551 = vmul.f32 %v489, 0.5
    %v552 = vmul.f32 %v494, 0.5
    %v553 = vmul.f32 %v499, 0.5
    %v554 = vmul.f32 %v504, 0.5
    %v555 = vmul.f32 %v509, 0.5
    %v556 = vmul.f32 %v514, 0.5
    %v557 = vmul.f32 %v519, 0.5
    %v558 = vmul.f32 %v524, 0.5
    %v559 = vmul.f32 %v529, 0.5
    %v560 = vmul.f32 %v534, 0.5
    %v561 = vmul.f32 %v539, 0.5
    %v562 = vmul.f32 %v544, 0.5
    %v563 = vmul.f32 %v469, 0.70710677
    %v564 = vmul.f32 %v474, 0.70710677
    %v565 = vmul.f32 %v479, 0.70710677
    %v566 = vmul.f32 %v484, 0.70710677
    %v567 = vmul.f32 %v489, 0.70710677
    %v568 = vmul.f32 %v494, 0.70710677
    %v569 = vmul.f32 %v499, 0.70710677
    %v570 = vmul.f32 %v504, 0.70710677
    %v571 = vmul.f32 %v509, 0.70710677
    %v572 = vmul.f32 %v514, 0.70710677
    %v573 = vmul.f32 %v519, 0.70710677
    %v574 = vmul.f32 %v524, 0.70710677
    %v575 = vmul.f32 %v529, 0.70710677
    %v576 = vmul.f32 %v534, 0.70710677
    %v577 = vmul.f32 %v539, 0.70710677
    %v578 = vmul.f32 %v544, 0.70710677
    %v579 = verf.f32.pop %v563
    %v580 = verf.f32.pop %v564
    %v581 = verf.f32.pop %v565
    %v582 = verf.f32.pop %v566
    %v583 = verf.f32.pop %v567
    %v584 = verf.f32.pop %v568
    %v585 = verf.f32.pop %v569
    %v586 = verf.f32.pop %v570
    %v587 = verf.f32.pop %v571
    %v588 = verf.f32.pop %v572
    %v589 = verf.f32.pop %v573
    %v590 = verf.f32.pop %v574
    %v591 = verf.f32.pop %v575
    %v592 = verf.f32.pop %v576
    %v593 = verf.f32.pop %v577
    %v594 = verf.f32.pop %v578
    %v595 = vadd.f32 %v579, 1.0
    %v596 = vadd.f32 %v580, 1.0
    %v597 = vadd.f32 %v581, 1.0
    %v598 = vadd.f32 %v582, 1.0
    %v599 = vadd.f32 %v583, 1.0
    %v600 = vadd.f32 %v584, 1.0
    %v601 = vadd.f32 %v585, 1.0
    %v602 = vadd.f32 %v586, 1.0
    %v603 = vadd.f32 %v587, 1.0
    %v604 = vadd.f32 %v588, 1.0
    %v605 = vadd.f32 %v589, 1.0
    %v606 = vadd.f32 %v590, 1.0
    %v607 = vadd.f32 %v591, 1.0
    %v608 = vadd.f32 %v592, 1.0
    %v609 = vadd.f32 %v593, 1.0
    %v610 = vadd.f32 %v594, 1.0
    %v611 = vmul.f32 %v547, %v595
    %v612 = vmul.f32 %v548, %v596
    %v613 = vmul.f32 %v549, %v597
    %v614 = vmul.f32 %v550, %v598
    %v615 = vmul.f32 %v551, %v599
    %v616 = vmul.f32 %v552, %v600
    %v617 = vmul.f32 %v553, %v601
    %v618 = vmul.f32 %v554, %v602
    %v619 = vmul.f32 %v555, %v603
    %v620 = vmul.f32 %v556, %v604
    %v621 = vmul.f32 %v557, %v605
    %v622 = vmul.f32 %v558, %v606
    %v623 = vmul.f32 %v559, %v607
    %v624 = vmul.f32 %v560, %v608
    %v625 = vmul.f32 %v561, %v609
    %v626 = vmul.f32 %v562, %v610
    %v627 = vld [vmem:[%s5] sm:$0x1]
    %v629 = vsel %vm353, %v627, 0
    %v632 = vsel %vm353, %v611, 0
    %v635 = vsel %vm353, %v612, 0
    %v638 = vsel %vm353, %v613, 0
    %v641 = vsel %vm353, %v614, 0
    %v644 = vsel %vm353, %v615, 0
    %v647 = vsel %vm353, %v616, 0
    %v650 = vsel %vm353, %v617, 0
    %v653 = vsel %vm353, %v618, 0
    %v656 = vsel %vm353, %v619, 0
    %v659 = vsel %vm353, %v620, 0
    %v662 = vsel %vm353, %v621, 0
    %v665 = vsel %vm353, %v622, 0
    %v668 = vsel %vm353, %v623, 0
    %v671 = vsel %vm353, %v624, 0
    %v674 = vsel %vm353, %v625, 0
    %v677 = vsel %vm353, %v626, 0
    %679 = vmatprep.subr.mxu0 0.0
    %680 = vmatpush1.xpose.msra.mxu0 %v677
    %681 = vmatprep.subr.mxu0 0.0
    %682 = vmatpush1.xpose.msra.mxu0 %v674
    %683 = vmatprep.subr.mxu0 0.0
    %684 = vmatpush1.xpose.msra.mxu0 %v671
    %685 = vmatprep.subr.mxu0 0.0
    %686 = vmatpush1.xpose.msra.mxu0 %v668
    %687 = vmatprep.subr.mxu0 0.0
    %688 = vmatpush1.xpose.msra.mxu0 %v665
    %689 = vmatprep.subr.mxu0 0.0
    %690 = vmatpush1.xpose.msra.mxu0 %v662
    %691 = vmatprep.subr.mxu0 0.0
    %692 = vmatpush1.xpose.msra.mxu0 %v659
    %693 = vmatprep.subr.mxu0 0.0
    %694 = vmatpush1.xpose.msra.mxu0 %v656
    %695 = vmatprep.subr.mxu0 0.0
    %696 = vmatpush1.xpose.msra.mxu0 %v653
    %697 = vmatprep.subr.mxu0 0.0
    %698 = vmatpush1.xpose.msra.mxu0 %v650
    %699 = vmatprep.subr.mxu0 0.0
    %700 = vmatpush1.xpose.msra.mxu0 %v647
    %701 = vmatprep.subr.mxu0 0.0
    %702 = vmatpush1.xpose.msra.mxu0 %v644
    %703 = vmatprep.subr.mxu0 0.0
    %704 = vmatpush1.xpose.msra.mxu0 %v641
    %705 = vmatprep.subr.mxu0 0.0
    %706 = vmatpush1.xpose.msra.mxu0 %v638
    %707 = vmatprep.subr.mxu0 0.0
    %708 = vmatpush1.xpose.msra.mxu0 %v635
    %709 = vmatprep.subr.mxu0 0.0
    %710 = vmatpush1.xpose.msra.mxu0 %v632
    %711 = vmatprep.subr.mxu0 0.0
    %712 = vmatpush2.xpose.msra.mxu0 0.0
    %713 = vmatprep.subr.mxu0 0.0
    %714 = vmatpush2.xpose.msra.mxu0 0.0
    %715 = vmatprep.subr.mxu0 0.0
    %716 = vmatpush2.xpose.msra.mxu0 0.0
    %717 = vmatprep.subr.mxu0 0.0
    %718 = vmatpush2.xpose.msra.mxu0 0.0
    %719 = vmatprep.subr.mxu0 0.0
    %720 = vmatpush2.xpose.msra.mxu0 0.0
    %721 = vmatprep.subr.mxu0 0.0
    %722 = vmatpush2.xpose.msra.mxu0 0.0
    %723 = vmatprep.subr.mxu0 0.0
    %724 = vmatpush2.xpose.msra.mxu0 0.0
    %725 = vmatprep.subr.mxu0 0.0
    %726 = vmatpush2.xpose.msra.mxu0 0.0
    %727 = vmatprep.subr.mxu0 0.0
    %728 = vmatpush2.xpose.msra.mxu0 0.0
    %729 = vmatprep.subr.mxu0 0.0
    %730 = vmatpush2.xpose.msra.mxu0 0.0
    %731 = vmatprep.subr.mxu0 0.0
    %732 = vmatpush2.xpose.msra.mxu0 0.0
    %733 = vmatprep.subr.mxu0 0.0
    %734 = vmatpush2.xpose.msra.mxu0 0.0
    %735 = vmatprep.subr.mxu0 0.0
    %736 = vmatpush2.xpose.msra.mxu0 0.0
    %737 = vmatprep.subr.mxu0 0.0
    %738 = vmatpush2.xpose.msra.mxu0 0.0
    %739 = vmatprep.subr.mxu0 0.0
    %740 = vmatpush2.xpose.msra.mxu0 0.0
    %741 = vmatprep.subr.mxu0 0.0
    %742 = vmatpush2.xpose.msra.mxu0 0.0
    %743 = vmatprep.mubr.f32.mxu0 0.0
    %744 = vmatmul.mubr.f32.gmra.mxu0 %v629
    %v745 = vpop.f32.mrf.mxu0
    %v746 = vadd.f32 0.0, %v745
    %v747 = vpop.f32.mrf.mxu0
    %748 = vdwg.mxu0
    %749 = vst [vmem:[%s6] sm:$0x1] %v746
    // Predicated region
    $region30: #{predictor_ss_forward.1} parent=1 // pred_check
      _
    $region31: #{predictor_ss_forward.1} parent=1 // pred_check_branch
      %751 = sbr.rel (0) target = $region33
    $region32: #{predictor_ss_forward.1} parent=1 // pred_region
      _
    $region33: #{predictor_ss_forward.1} parent=1 // pred_fallthru
      _
    // Predicated region
    $region34: #{predictor_ss_forward.1} parent=1 // pred_check
      _
    $region35: #{predictor_ss_forward.1} parent=1 // pred_check_branch
      %753 = sbr.rel (0) target = $region37
    $region36: #{predictor_ss_forward.1} parent=1 // pred_region
      _
    $region37: #{predictor_ss_forward.1} parent=1 // pred_fallthru
      _
    %754 = vsyncpa [#allocation3], 1

</llo_original>
